<compile_context>
chip_gen: v7x
topology: tpu7x:2x2x1
jax: 0.10.0
libtpu: 0.0.40
codegen_flags: <defaults>
</compile_context>

<pallas_src>
import jax
import jax.numpy as jnp
from jax.experimental import pallas as pl
from jax.experimental.pallas import tpu as pltpu


def _round_up(n: int, m: int) -> int:
    return ((n + m - 1) // m) * m


def _pick_tile_b(batch: int, d_in_pad: int, d_out_pad: int,
                 vmem_budget_bytes: int = 16 * 1024 * 1024) -> int:
    """Largest batch tile (multiple of 8) that fits a conservative VMEM budget
    with double-buffered x/y tiles plus resident W/b — safe on v5e/v6e/v7x."""
    resident = 4 * 2 * (d_in_pad * d_out_pad + d_out_pad)        # W + b
    per_row = 4 * 2 * (d_in_pad + 2 * d_out_pad)                  # x + y (+ slack)
    budget = max(vmem_budget_bytes - resident, 8 * per_row)
    tile = budget // per_row
    tile = min(tile, 1024)                                        # cap step latency
    tile = max((tile // 8) * 8, 8)
    b8 = _round_up(batch, 8)
    return min(tile, b8)


def _objective_kernel(batch_size: int, mask_rows: bool):
    def kernel(alpha_ref, x_ref, w_ref, b_ref, y_ref, part_ref):
        i = pl.program_id(0)
        tile_b, d_out_pad = y_ref.shape

        # z = x @ W + b  on the MXU with f32 accumulation.
        z = jnp.dot(x_ref[...], w_ref[...], preferred_element_type=jnp.float32)
        z = z + b_ref[...]

        r = z - y_ref[...]
        if mask_rows:
            # Zero out rows past the true batch size (last tile padding).
            row = (jax.lax.broadcasted_iota(jnp.int32, (tile_b, d_out_pad), 0)
                   + i * tile_b)
            r = jnp.where(row < batch_size, r, 0.0)

        # Partial reduction only: collapse batch rows into a sublane-aligned
        # (8, d_out_pad) slab; the final scalar collapse happens once outside
        # the kernel (keeps the hot loop off the XLU and lane-dense stores).
        rr = (r * r).reshape(tile_b // 8, 8, d_out_pad)
        part = jnp.sum(rr, axis=0)
        part_ref[0] = part

        # Tikhonov regularizer: add alpha * ||W||^2 exactly once (tile 0),
        # folded into a single element of that tile's partial block.
        @pl.when(i == 0)
        def _():
            w = w_ref[...]
            reg = alpha_ref[0, 0] * jnp.sum(w * w)
            sub = jax.lax.broadcasted_iota(jnp.int32, (8, d_out_pad), 0)
            lane = jax.lax.broadcasted_iota(jnp.int32, (8, d_out_pad), 1)
            bump = jnp.where((sub == 0) & (lane == 0), reg, 0.0)
            part_ref[0] = part_ref[0] + bump

    return kernel


def objective_function(x, w, b, y, alpha=0.0):
    """f = 0.5*||x @ w + b - y||^2 + alpha * 0.5*||w||^2 via a Pallas kernel."""
    B, D_in = x.shape
    D_out = w.shape[1]

    d_in_pad = _round_up(D_in, 128)
    d_out_pad = _round_up(D_out, 128)
    tile_b = _pick_tile_b(B, d_in_pad, d_out_pad)
    b_pad = _round_up(B, tile_b)
    num_tiles = b_pad // tile_b
    mask_rows = b_pad != B

    # Zero padding is exact: padded columns contribute 0 to z, r and reg;
    # padded rows are masked in-kernel.
    xp = jnp.pad(x.astype(jnp.float32),
                 ((0, b_pad - B), (0, d_in_pad - D_in)))
    wp = jnp.pad(w.astype(jnp.float32),
                 ((0, d_in_pad - D_in), (0, d_out_pad - D_out)))
    bp = jnp.pad(b.reshape(1, -1).astype(jnp.float32),
                 ((0, 0), (0, d_out_pad - D_out)))
    yp = jnp.pad(y.astype(jnp.float32),
                 ((0, b_pad - B), (0, d_out_pad - D_out)))
    alpha_arr = jnp.asarray(alpha, dtype=jnp.float32).reshape(1, 1)

    cost = pl.CostEstimate(
        flops=2 * b_pad * d_in_pad * d_out_pad,
        transcendentals=0,
        bytes_accessed=4 * (b_pad * d_in_pad + b_pad * d_out_pad
                            + d_in_pad * d_out_pad + d_out_pad
                            + num_tiles * 8 * d_out_pad),
    )

    partials = pl.pallas_call(
        _objective_kernel(B, mask_rows),
        out_shape=jax.ShapeDtypeStruct((num_tiles, 8, d_out_pad), jnp.float32),
        grid=(num_tiles,),
        in_specs=[
            pl.BlockSpec((1, 1), lambda i: (0, 0),
                         memory_space=pltpu.MemorySpace.SMEM),   # alpha
            pl.BlockSpec((tile_b, d_in_pad), lambda i: (i, 0)),  # x (streamed)
            pl.BlockSpec((d_in_pad, d_out_pad), lambda i: (0, 0)),  # W (resident)
            pl.BlockSpec((1, d_out_pad), lambda i: (0, 0)),      # b (resident)
            pl.BlockSpec((tile_b, d_out_pad), lambda i: (i, 0)),  # y (streamed)
        ],
        out_specs=pl.BlockSpec((1, 8, d_out_pad), lambda i: (i, 0, 0)),
        compiler_params=pltpu.CompilerParams(
            dimension_semantics=("parallel",)),
        cost_estimate=cost,
    )(alpha_arr, xp, wp, bp, yp)

    # Tiny final cross-tile / cross-lane collapse (done once, outside kernel).
    return 0.5 * jnp.sum(partials)


def objective_function_ref(x, w, b, y, alpha=0.0):
    z = x.astype(jnp.float32) @ w.astype(jnp.float32) + b.astype(jnp.float32)
    r = z - y.astype(jnp.float32)
    return 0.5 * jnp.sum(r * r) + alpha * 0.5 * jnp.sum(
        w.astype(jnp.float32) ** 2
    )


if __name__ == "__main__":
    B, D_IN, D_OUT = 8, 32, 16
    ALPHA = 0.1

    key = jax.random.PRNGKey(0)
    kx, kw, kb, ky = jax.random.split(key, 4)

    x = jax.random.normal(kx, (B, D_IN), dtype=jnp.float32)
    # deterministic synthetic "net" parameters (linear layer)
    w = 0.1 * jax.random.normal(kw, (D_IN, D_OUT), dtype=jnp.float32)
    b = 0.01 * jax.random.normal(kb, (D_OUT,), dtype=jnp.float32)
    y = jax.random.normal(ky, (B, D_OUT), dtype=jnp.float32)

    f = objective_function(x, w, b, y, alpha=ALPHA)
    f = jax.block_until_ready(f)

    f_ref = objective_function_ref(x, w, b, y, alpha=ALPHA)
    assert jnp.allclose(f, f_ref, rtol=1e-5, atol=1e-5), (f, f_ref)

    print("KERNEL_OK")
</pallas_src>

<mosaic_0001>
module attributes {stable_mosaic.version = 11 : i64} {
  func.func @kernel(%arg0: i32, %arg1: memref<1x1xf32, #tpu.memory_space<smem>>, %arg2: memref<8x128xf32, #tpu.memory_space<vmem>>, %arg3: memref<128x128xf32, #tpu.memory_space<vmem>>, %arg4: memref<1x128xf32, #tpu.memory_space<vmem>>, %arg5: memref<8x128xf32, #tpu.memory_space<vmem>>, %arg6: memref<1x8x128xf32, #tpu.memory_space<vmem>>) attributes {dimension_semantics = [#tpu.dimension_semantics<parallel>], iteration_bounds = array<i64: 1>, scalar_prefetch = 0 : i64, scratch_operands = 0 : i64, tpu.core_type = #tpu.core_type<tc>, window_params = [{transform_indices = @transform_0, window_bounds = array<i64: 1, 1>}, {transform_indices = @transform_1, window_bounds = array<i64: 8, 128>}, {pipeline_mode = #tpu.pipeline_mode<synchronous>, transform_indices = @transform_2, window_bounds = array<i64: 128, 128>}, {pipeline_mode = #tpu.pipeline_mode<synchronous>, transform_indices = @transform_3, window_bounds = array<i64: 1, 128>}, {transform_indices = @transform_4, window_bounds = array<i64: 8, 128>}, {transform_indices = @transform_5, window_bounds = array<i64: 1, 8, 128>}]} {
    %c0 = arith.constant 0 : index
    %c0_0 = arith.constant 0 : index
    %0 = vector.load %arg2[%c0, %c0_0] : memref<8x128xf32, #tpu.memory_space<vmem>>, vector<8x128xf32>
    %c0_1 = arith.constant 0 : index
    %c0_2 = arith.constant 0 : index
    %1 = vector.load %arg3[%c0_1, %c0_2] : memref<128x128xf32, #tpu.memory_space<vmem>>, vector<128x128xf32>
    %cst = arith.constant dense<0.000000e+00> : vector<8x128xf32>
    %2 = tpu.matmul %0, %1, %cst {dimension_numbers = #tpu.dot_dimension_numbers<[1], [0], [0], [1], [0, 0, 1, 1], [], []>} : vector<8x128xf32>, vector<128x128xf32>, vector<8x128xf32> -> vector<8x128xf32>
    %c0_3 = arith.constant 0 : index
    %c0_4 = arith.constant 0 : index
    %3 = vector.load %arg4[%c0_3, %c0_4] : memref<1x128xf32, #tpu.memory_space<vmem>>, vector<1x128xf32>
    %4 = vector.broadcast %3 : vector<1x128xf32> to vector<8x128xf32>
    %5 = arith.addf %2, %4 : vector<8x128xf32>
    %c0_5 = arith.constant 0 : index
    %c0_6 = arith.constant 0 : index
    %6 = vector.load %arg5[%c0_5, %c0_6] : memref<8x128xf32, #tpu.memory_space<vmem>>, vector<8x128xf32>
    %7 = arith.subf %5, %6 : vector<8x128xf32>
    %8 = arith.mulf %7, %7 : vector<8x128xf32>
    %9 = vector.shape_cast %8 : vector<8x128xf32> to vector<1x8x128xf32>
    %cst_7 = arith.constant dense<0.000000e+00> : vector<8x128xf32>
    %10 = vector.multi_reduction <add>, %9, %cst_7 [0] : vector<1x8x128xf32> to vector<8x128xf32>
    %c0_8 = arith.constant 0 : index
    %c0_9 = arith.constant 0 : index
    %c0_10 = arith.constant 0 : index
    %11 = vector.load %arg6[%c0_8, %c0_9, %c0_10] : memref<1x8x128xf32, #tpu.memory_space<vmem>>, vector<1x8x128xf32>
    %12 = vector.shape_cast %11 : vector<1x8x128xf32> to vector<8x128xf32>
    %13 = vector.shape_cast %10 : vector<8x128xf32> to vector<1x8x128xf32>
    tpu.vector_store %arg6[%c0_8, %c0_9, %c0_10], %13 {strides = array<i32>} : memref<1x8x128xf32, #tpu.memory_space<vmem>>, vector<1x8x128xf32>,
    %c0_i32 = arith.constant 0 : i32
    %14 = arith.cmpi eq, %arg0, %c0_i32 : i32
    %15 = arith.extui %14 : i1 to i32
    %c0_i32_11 = arith.constant 0 : i32
    %16 = arith.cmpi ne, %15, %c0_i32_11 : i32
    scf.if %16 {
      %c0_12 = arith.constant 0 : index
      %c0_13 = arith.constant 0 : index
      %17 = vector.load %arg3[%c0_12, %c0_13] : memref<128x128xf32, #tpu.memory_space<vmem>>, vector<128x128xf32>
      %c0_14 = arith.constant 0 : index
      %c0_15 = arith.constant 0 : index
      %18 = memref.load %arg1[%c0_14, %c0_15] : memref<1x1xf32, #tpu.memory_space<smem>>
      %19 = arith.mulf %17, %17 : vector<128x128xf32>
      %20 = vector.shape_cast %19 : vector<128x128xf32> to vector<1x128x128xf32>
      %cst_16 = arith.constant dense<0.000000e+00> : vector<1xf32>
      %21 = vector.multi_reduction <add>, %20, %cst_16 [1, 2] : vector<1x128x128xf32> to vector<1xf32>
      %22 = vector.shape_cast %21 : vector<1xf32> to vector<1x1x1xf32>
      %23 = vector.extract %22[0, 0, 0] : f32 from vector<1x1x1xf32>
      %24 = arith.mulf %18, %23 : f32
      %25 = tpu.iota {dimensions = array<i32: 0>} : vector<8x128xi32>
      %26 = tpu.iota {dimensions = array<i32: 1>} : vector<8x128xi32>
      %c0_i32_17 = arith.constant 0 : i32
      %27 = vector.broadcast %c0_i32_17 : i32 to vector<8x128xi32>
      %28 = arith.cmpi eq, %25, %27 : vector<8x128xi32>
      %c0_i32_18 = arith.constant 0 : i32
      %29 = vector.broadcast %c0_i32_18 : i32 to vector<8x128xi32>
      %30 = arith.cmpi eq, %26, %29 : vector<8x128xi32>
      %31 = arith.andi %28, %30 : vector<8x128xi1>
      %cst_19 = arith.constant 0.000000e+00 : f32
      %32 = vector.broadcast %24 : f32 to vector<8x128xf32>
      %33 = vector.broadcast %cst_19 : f32 to vector<8x128xf32>
      %34 = arith.select %31, %32, %33 : vector<8x128xi1>, vector<8x128xf32>
      %c0_20 = arith.constant 0 : index
      %c0_21 = arith.constant 0 : index
      %c0_22 = arith.constant 0 : index
      %35 = vector.load %arg6[%c0_20, %c0_21, %c0_22] : memref<1x8x128xf32, #tpu.memory_space<vmem>>, vector<1x8x128xf32>
      %36 = vector.shape_cast %35 : vector<1x8x128xf32> to vector<8x128xf32>
      %37 = arith.addf %36, %34 : vector<8x128xf32>
      %c0_23 = arith.constant 0 : index
      %c0_24 = arith.constant 0 : index
      %c0_25 = arith.constant 0 : index
      %38 = vector.load %arg6[%c0_23, %c0_24, %c0_25] : memref<1x8x128xf32, #tpu.memory_space<vmem>>, vector<1x8x128xf32>
      %39 = vector.shape_cast %38 : vector<1x8x128xf32> to vector<8x128xf32>
      %40 = vector.shape_cast %37 : vector<8x128xf32> to vector<1x8x128xf32>
      tpu.vector_store %arg6[%c0_23, %c0_24, %c0_25], %40 {strides = array<i32>} : memref<1x8x128xf32, #tpu.memory_space<vmem>>, vector<1x8x128xf32>,
    } else {
    }
    return
  }
  func.func @transform_0(%arg0: i32) -> (i32, i32) {
    %c0_i32 = arith.constant 0 : i32
    %c0_i32_0 = arith.constant 0 : i32
    %c0_i32_1 = arith.constant 0 : i32
    return %c0_i32, %c0_i32_0 : i32, i32
  }
  func.func @transform_1(%arg0: i32) -> (i32, i32) {
    %c0_i32 = arith.constant 0 : i32
    %c0_i32_0 = arith.constant 0 : i32
    return %arg0, %c0_i32 : i32, i32
  }
  func.func @transform_2(%arg0: i32) -> (i32, i32) {
    %c0_i32 = arith.constant 0 : i32
    %c0_i32_0 = arith.constant 0 : i32
    %c0_i32_1 = arith.constant 0 : i32
    return %c0_i32, %c0_i32_0 : i32, i32
  }
  func.func @transform_3(%arg0: i32) -> (i32, i32) {
    %c0_i32 = arith.constant 0 : i32
    %c0_i32_0 = arith.constant 0 : i32
    %c0_i32_1 = arith.constant 0 : i32
    return %c0_i32, %c0_i32_0 : i32, i32
  }
  func.func @transform_4(%arg0: i32) -> (i32, i32) {
    %c0_i32 = arith.constant 0 : i32
    %c0_i32_0 = arith.constant 0 : i32
    return %arg0, %c0_i32 : i32, i32
  }
  func.func @transform_5(%arg0: i32) -> (i32, i32, i32) {
    %c0_i32 = arith.constant 0 : i32
    %c0_i32_0 = arith.constant 0 : i32
    %c0_i32_1 = arith.constant 0 : i32
    return %arg0, %c0_i32, %c0_i32_0 : i32, i32, i32
  }
}

</mosaic_0001>

<llo_original>
// kernel: tpu_custom_call.1
$region0: #{tpu_custom_call.1}
  #allocation0 [shape = 'u32[]', space=smem, size = 0x4, offset = 0x4, fixed_abs, tag = 'smem constant byte address 0x4 - core index']
  #allocation1 [shape = 'u32[144,128]{1,0:T(1,128)}', space=vmem, size = 0x12000, scoped, tag = 'internal scratch']
  #allocation2 [shape = 'f32[1,1]{1,0:T(1,128)S(6)}', space=smem, size = 0x200, scoped, tag = 'scoped memory for tpu_custom_call.1']
  %s0 = inlined_call_operand.<no memory space> [shape: f32[1,1], index: 0, kind: input, shape index: {}]
  %s1 = inlined_call_operand.hbm [shape: f32[8,128], index: 1, kind: input, shape index: {}]
  %s2 = inlined_call_operand.hbm [shape: f32[128,128], index: 2, kind: input, shape index: {}]
  %s3 = inlined_call_operand.vmem [shape: f32[1,128], index: 3, kind: input, shape index: {}]
  %s4 = inlined_call_operand.vmem [shape: f32[8,128], index: 4, kind: input, shape index: {}]
  %s5 = inlined_call_operand.hbm [shape: f32[1,8,128], index: 5, kind: output, shape index: {}]
  %s6 = sld [smem:[#allocation0]]
  $region42: #{tpu_custom_call.1} parent=0
    _
  %s8 = ssub.s32 1, %s6
  %s9 = scalar_select 0, %s8, %s6
  %10 = sst [smem:[#allocation2]] %s0
  $region1: #{tpu_custom_call.1} parent=0
    #allocation3 [shape = 'u8[4096]{0}', space=vmem, size = 0x1000, scoped, tag = 'input window, operand 1, single buffered']
    #allocation4 [shape = 's32[1]{0}', space=sflag, size = 0x4, scoped, tag = 'scoped memory for tpu_custom_call.1']
    #allocation5 [shape = 's32[1]{0}', space=sflag, size = 0x4, scoped, tag = 'scoped memory for tpu_custom_call.1']
    #allocation6 [shape = 'u8[65536]{0}', space=vmem, size = 0x10000, scoped, tag = 'input window, operand 2, single buffered']
    #allocation7 [shape = 's32[1]{0}', space=sflag, size = 0x4, scoped, tag = 'scoped memory for tpu_custom_call.1']
    #allocation8 [shape = 'u8[4096]{0}', space=vmem, size = 0x1000, scoped, tag = 'output window, operand 0, single buffered']
    %11 = vsyncpa [#allocation4], 0
    %12 = vsyncpa [#allocation7], 0
    %13 = vsyncpa [#allocation5], 0
    // Predicated region
    $region2: #{tpu_custom_call.1} parent=1 // pred_check
      _
    $region3: #{tpu_custom_call.1} parent=1 // pred_check_branch
      %15 = sbr.rel (0) target = $region5
    $region4: #{tpu_custom_call.1} parent=1 // pred_region
      _
    $region5: #{tpu_custom_call.1} parent=1 // pred_fallthru
      _
    // Predicated region
    $region6: #{tpu_custom_call.1} parent=1 // pred_check
      _
    $region7: #{tpu_custom_call.1} parent=1 // pred_check_branch
      %17 = sbr.rel (0) target = $region9
    $region8: #{tpu_custom_call.1} parent=1 // pred_region
      %s19 = ssub.s32 128, 128
      %20 = vsyncadd [#allocation4], %s19
      %s22 = sshll.u32 [#allocation3], 4
      %s23 = int_to_ptr.vmem [resolvable:$true] %s22
      %25 = dma.hbm_to_vmem [thread:$0]  %s1, 128, %s23, [#allocation4]
    $region9: #{tpu_custom_call.1} parent=1 // pred_fallthru
      _
    // Predicated region
    $region10: #{tpu_custom_call.1} parent=1 // pred_check
      _
    $region11: #{tpu_custom_call.1} parent=1 // pred_check_branch
      %27 = sbr.rel (0) target = $region13
    $region12: #{tpu_custom_call.1} parent=1 // pred_region
      %s29 = ssub.s32 2048, 2048
      %30 = vsyncadd [#allocation7], %s29
      %s31 = sshll.u32 [#allocation6], 4
      %s32 = int_to_ptr.vmem [resolvable:$true] %s31
      %37 = dma.hbm_to_vmem [thread:$0]  %s2, 2048, %s32, [#allocation7], 128, 128, 8
    $region13: #{tpu_custom_call.1} parent=1 // pred_fallthru
      _
    // Predicated region
    $region14: #{tpu_custom_call.1} parent=1 // pred_check
      _
    $region15: #{tpu_custom_call.1} parent=1 // pred_check_branch
      %39 = sbr.rel (0) target = $region17
    $region16: #{tpu_custom_call.1} parent=1 // pred_region
      _
    $region17: #{tpu_custom_call.1} parent=1 // pred_fallthru
      _
    // Predicated region
    $region18: #{tpu_custom_call.1} parent=1 // pred_check
      _
    $region19: #{tpu_custom_call.1} parent=1 // pred_check_branch
      %41 = sbr.rel (0) target = $region21
    $region20: #{tpu_custom_call.1} parent=1 // pred_region
      _
    $region21: #{tpu_custom_call.1} parent=1 // pred_fallthru
      _
    // Predicated region
    $region22: #{tpu_custom_call.1} parent=1 // pred_check
      _
    $region23: #{tpu_custom_call.1} parent=1 // pred_check_branch
      %43 = sbr.rel (0) target = $region25
    $region24: #{tpu_custom_call.1} parent=1 // pred_region
      %44 = dma.done [#allocation4], 128
    $region25: #{tpu_custom_call.1} parent=1 // pred_fallthru
      _
    // Predicated region
    $region26: #{tpu_custom_call.1} parent=1 // pred_check
      _
    $region27: #{tpu_custom_call.1} parent=1 // pred_check_branch
      %46 = sbr.rel (0) target = $region29
    $region28: #{tpu_custom_call.1} parent=1 // pred_region
      %47 = dma.done [#allocation7], 2048
    $region29: #{tpu_custom_call.1} parent=1 // pred_fallthru
      _
    %v48 = vld [vmem:[#allocation3] sm:$0xff]
    %v49 = vld [vmem:[#allocation6] sm:$0xff]
    %v50 = vld [vmem:[#allocation6 + $0x8] sm:$0xff]
    %v51 = vld [vmem:[#allocation6 + $0x10] sm:$0xff]
    %v52 = vld [vmem:[#allocation6 + $0x18] sm:$0xff]
    %v53 = vld [vmem:[#allocation6 + $0x20] sm:$0xff]
    %v54 = vld [vmem:[#allocation6 + $0x28] sm:$0xff]
    %v55 = vld [vmem:[#allocation6 + $0x30] sm:$0xff]
    %v56 = vld [vmem:[#allocation6 + $0x38] sm:$0xff]
    %v57 = vld [vmem:[#allocation6 + $0x40] sm:$0xff]
    %v58 = vld [vmem:[#allocation6 + $0x48] sm:$0xff]
    %v59 = vld [vmem:[#allocation6 + $0x50] sm:$0xff]
    %v60 = vld [vmem:[#allocation6 + $0x58] sm:$0xff]
    %v61 = vld [vmem:[#allocation6 + $0x60] sm:$0xff]
    %v62 = vld [vmem:[#allocation6 + $0x68] sm:$0xff]
    %v63 = vld [vmem:[#allocation6 + $0x70] sm:$0xff]
    %v64 = vld [vmem:[#allocation6 + $0x78] sm:$0xff]
    %v65 = vld [vmem:[%s3] sm:$0x1]
    %v67 = vlaneseq
    %v68 = vshrl.u32 %v67, 7
    %v69 = vsub.s32 0, %v68
    %v70 = vrot.slane %v65, %v69
    %72 = vmatprep.subr.mxu0 0.0
    %73 = vmatpush1.msra.mxu0 %v49
    %74 = vmatprep.subr.mxu0 0.0
    %75 = vmatpush1.msra.mxu0 %v50
    %76 = vmatprep.subr.mxu0 0.0
    %77 = vmatpush1.msra.mxu0 %v51
    %78 = vmatprep.subr.mxu0 0.0
    %79 = vmatpush1.msra.mxu0 %v52
    %80 = vmatprep.subr.mxu0 0.0
    %81 = vmatpush1.msra.mxu0 %v53
    %82 = vmatprep.subr.mxu0 0.0
    %83 = vmatpush1.msra.mxu0 %v54
    %84 = vmatprep.subr.mxu0 0.0
    %85 = vmatpush1.msra.mxu0 %v55
    %86 = vmatprep.subr.mxu0 0.0
    %87 = vmatpush1.msra.mxu0 %v56
    %88 = vmatprep.subr.mxu0 0.0
    %89 = vmatpush1.msra.mxu0 %v57
    %90 = vmatprep.subr.mxu0 0.0
    %91 = vmatpush1.msra.mxu0 %v58
    %92 = vmatprep.subr.mxu0 0.0
    %93 = vmatpush1.msra.mxu0 %v59
    %94 = vmatprep.subr.mxu0 0.0
    %95 = vmatpush1.msra.mxu0 %v60
    %96 = vmatprep.subr.mxu0 0.0
    %97 = vmatpush1.msra.mxu0 %v61
    %98 = vmatprep.subr.mxu0 0.0
    %99 = vmatpush1.msra.mxu0 %v62
    %100 = vmatprep.subr.mxu0 0.0
    %101 = vmatpush1.msra.mxu0 %v63
    %102 = vmatprep.subr.mxu0 0.0
    %103 = vmatpush1.msra.mxu0 %v64
    %104 = vmatprep.subr.mxu0 0.0
    %105 = vmatpush1.msra.mxu0 0.0
    %106 = vmatprep.subr.mxu0 0.0
    %107 = vmatpush1.msra.mxu0 0.0
    %108 = vmatprep.subr.mxu0 0.0
    %109 = vmatpush1.msra.mxu0 0.0
    %110 = vmatprep.subr.mxu0 0.0
    %111 = vmatpush1.msra.mxu0 0.0
    %112 = vmatprep.subr.mxu0 0.0
    %113 = vmatpush1.msra.mxu0 0.0
    %114 = vmatprep.subr.mxu0 0.0
    %115 = vmatpush1.msra.mxu0 0.0
    %116 = vmatprep.subr.mxu0 0.0
    %117 = vmatpush1.msra.mxu0 0.0
    %118 = vmatprep.subr.mxu0 0.0
    %119 = vmatpush1.msra.mxu0 0.0
    %120 = vmatprep.subr.mxu0 0.0
    %121 = vmatpush1.msra.mxu0 0.0
    %122 = vmatprep.subr.mxu0 0.0
    %123 = vmatpush1.msra.mxu0 0.0
    %124 = vmatprep.subr.mxu0 0.0
    %125 = vmatpush1.msra.mxu0 0.0
    %126 = vmatprep.subr.mxu0 0.0
    %127 = vmatpush1.msra.mxu0 0.0
    %128 = vmatprep.subr.mxu0 0.0
    %129 = vmatpush1.msra.mxu0 0.0
    %130 = vmatprep.subr.mxu0 0.0
    %131 = vmatpush1.msra.mxu0 0.0
    %132 = vmatprep.subr.mxu0 0.0
    %133 = vmatpush1.msra.mxu0 0.0
    %134 = vmatprep.subr.mxu0 0.0
    %135 = vmatpush1.msra.mxu0 0.0
    %136 = vmatprep.mubr.f32.mxu0 0.0
    %137 = vmatmul.mubr.f32.gmra.mrb[0].mxu0 %v48
    %v138 = vpop.f32.mrb[0].mxu0
    %v139 = vadd.f32 %v70, %v138
    %v140 = vpop.f32.mrb[0].mxu0
    %141 = vdwg.mxu0
    %v142 = vld [vmem:[%s4] sm:$0xff]
    %v143 = vsub.f32 %v139, %v142
    %v144 = vmul.f32 %v143, %v143
    %v145 = vadd.f32 %v144, 0.0
    %146 = vst [vmem:[#allocation8] sm:$0xff] %v145
    %p147 = scmp.eq.s32.totalorder 0, 0
    // Predicated region
    $region30: #{tpu_custom_call.1} parent=1 // pred_check
      %p148 = pneg %p147
    $region31: #{tpu_custom_call.1} parent=1 // pred_check_branch
      %150 = sbr.rel (%p148) target = $region33
    $region32: #{tpu_custom_call.1} parent=1 // pred_region
      %v151 = vld [vmem:[#allocation6] sm:$0xff]
      %v152 = vld [vmem:[#allocation6 + $0x8] sm:$0xff]
      %v153 = vld [vmem:[#allocation6 + $0x10] sm:$0xff]
      %v154 = vld [vmem:[#allocation6 + $0x18] sm:$0xff]
      %v155 = vld [vmem:[#allocation6 + $0x20] sm:$0xff]
      %v156 = vld [vmem:[#allocation6 + $0x28] sm:$0xff]
      %v157 = vld [vmem:[#allocation6 + $0x30] sm:$0xff]
      %v158 = vld [vmem:[#allocation6 + $0x38] sm:$0xff]
      %v159 = vld [vmem:[#allocation6 + $0x40] sm:$0xff]
      %v160 = vld [vmem:[#allocation6 + $0x48] sm:$0xff]
      %v161 = vld [vmem:[#allocation6 + $0x50] sm:$0xff]
      %v162 = vld [vmem:[#allocation6 + $0x58] sm:$0xff]
      %v163 = vld [vmem:[#allocation6 + $0x60] sm:$0xff]
      %v164 = vld [vmem:[#allocation6 + $0x68] sm:$0xff]
      %v165 = vld [vmem:[#allocation6 + $0x70] sm:$0xff]
      %v166 = vld [vmem:[#allocation6 + $0x78] sm:$0xff]
      %s167 = sld [smem:[#allocation2]]
      %v168 = vmul.f32 %v151, %v151
      %v169 = vmul.f32 %v152, %v152
      %v170 = vmul.f32 %v153, %v153
      %v171 = vmul.f32 %v154, %v154
      %v172 = vmul.f32 %v155, %v155
      %v173 = vmul.f32 %v156, %v156
      %v174 = vmul.f32 %v157, %v157
      %v175 = vmul.f32 %v158, %v158
      %v176 = vmul.f32 %v159, %v159
      %v177 = vmul.f32 %v160, %v160
      %v178 = vmul.f32 %v161, %v161
      %v179 = vmul.f32 %v162, %v162
      %v180 = vmul.f32 %v163, %v163
      %v181 = vmul.f32 %v164, %v164
      %v182 = vmul.f32 %v165, %v165
      %v183 = vmul.f32 %v166, %v166
      %v184 = vadd.f32 %v168, %v169
      %v185 = vadd.f32 %v184, %v170
      %v186 = vadd.f32 %v185, %v171
      %v187 = vadd.f32 %v186, %v172
      %v188 = vadd.f32 %v187, %v173
      %v189 = vadd.f32 %v188, %v174
      %v190 = vadd.f32 %v189, %v175
      %v191 = vadd.f32 %v190, %v176
      %v192 = vadd.f32 %v191, %v177
      %v193 = vadd.f32 %v192, %v178
      %v194 = vadd.f32 %v193, %v179
      %v195 = vadd.f32 %v194, %v180
      %v196 = vadd.f32 %v195, %v181
      %v197 = vadd.f32 %v196, %v182
      %v198 = vadd.f32 %v197, %v183
      %199 = vadd.xlane.f32.xlu0 %v198
      %v200 = vpop.xlane.xlu0 %199
      %v201 = vrot.slane %v200, 4
      %v202 = vadd.f32 %v200, %v201
      %v203 = vrot.slane %v202, 2
      %v204 = vadd.f32 %v202, %v203
      %v205 = vrot.slane %v204, 1
      %v206 = vadd.f32 %v204, %v205
      %s207 = vtos %v206
      %s208 = smul.f32 %s167, %s207
      %v209 = vlaneseq
      %v210 = vshrl.u32 %v209, 7
      %v211 = vlaneseq
      %v212 = vand.u32 %v211, 127
      %vm213 = vcmp.eq.s32.totalorder %v210, 0
      %vm214 = vcmp.eq.s32.totalorder %v212, 0
      %vm215 = vmand %vm213, %vm214
      %v216 = vstv %s208
      %v217 = vsel %vm215, %v216, 0.0
      %v218 = vld [vmem:[#allocation8] sm:$0xff]
      %v219 = vadd.f32 %v218, %v217
      %220 = vst [vmem:[#allocation8] sm:$0xff] %v219
    $region33: #{tpu_custom_call.1} parent=1 // pred_fallthru
      _
    // Predicated region
    $region34: #{tpu_custom_call.1} parent=1 // pred_check
      _
    $region35: #{tpu_custom_call.1} parent=1 // pred_check_branch
      %222 = sbr.rel (0) target = $region37
    $region36: #{tpu_custom_call.1} parent=1 // pred_region
      %s224 = ssub.s32 128, 128
      %225 = vsyncadd [#allocation5], %s224
      %s227 = sshll.u32 [#allocation8], 4
      %s228 = int_to_ptr.vmem [resolvable:$true] %s227
      %230 = dma.vmem_to_hbm [thread:$0]  %s228, 128, %s5, [#allocation5]
    $region37: #{tpu_custom_call.1} parent=1 // pred_fallthru
      _
    // Predicated region
    $region38: #{tpu_custom_call.1} parent=1 // pred_check
      _
    $region39: #{tpu_custom_call.1} parent=1 // pred_check_branch
      %232 = sbr.rel (0) target = $region41
    $region40: #{tpu_custom_call.1} parent=1 // pred_region
      %233 = dma.done [#allocation5], 128
    $region41: #{tpu_custom_call.1} parent=1 // pred_fallthru
      _
    %234 = vsyncpa [#allocation4], 1
    %235 = vsyncpa [#allocation7], 1
    %236 = vsyncpa [#allocation5], 1

</llo_original>
